<compile_context>
chip_gen: v7x
topology: tpu7x:2x2x1
jax: 0.10.0
libtpu: 0.0.40
codegen_flags: <defaults>
</compile_context>

<pallas_src>
import jax
import jax.numpy as jnp
from jax import lax
from jax.experimental import pallas as pl
from jax.experimental.pallas import tpu as pltpu

LANE = 128   # lane width  (feature-dim padding target)
SUB = 8      # sublane width (node-row padding target)
VMEM_LIMIT = 48 * 1024 * 1024


def _rup(x, m):
    return ((x + m - 1) // m) * m


def _pad2(a, rows, cols):
    return jnp.pad(a, ((0, rows - a.shape[0]), (0, cols - a.shape[1])))


# ------------------- fused node+id encoder + first projection ------------------- #

def encode_kernel(xid_ref, w_ref, b_ref, pool_ref, pw_ref, pb_ref,
                  tab_ref, pred_ref):
    f32 = jnp.float32
    # packed table [x_enc || id_enc] in one matmul (block-structured weights)
    tab = jnp.dot(xid_ref[...], w_ref[...], preferred_element_type=f32) + b_ref[...]
    tab_ref[...] = tab
    # fused global_add_pool + jk projection of x_interm[0]
    # (proj weight rows for the id columns are zero, so only x_enc contributes)
    xg = jnp.dot(pool_ref[...], tab, preferred_element_type=f32)
    pred_ref[...] = jnp.dot(xg, pw_ref[...], preferred_element_type=f32) + pb_ref[...]


def pallas_encode(xid, w, b, pool, pw, pb):
    n_pad = xid.shape[0]
    cp0 = w.shape[1]
    bsz = pool.shape[0]
    p_p = pw.shape[1]
    vmem = pl.BlockSpec(memory_space=pltpu.MemorySpace.VMEM)
    # TODO(synk): for very large N this call should be gridded over node tiles
    # (pool accumulation in scratch + epilogue projection) to bound VMEM on v7x.
    return pl.pallas_call(
        encode_kernel,
        out_shape=(jax.ShapeDtypeStruct((n_pad, cp0), jnp.float32),
                   jax.ShapeDtypeStruct((bsz, p_p), jnp.float32)),
        in_specs=[vmem] * 6,
        out_specs=(vmem, vmem),
        compiler_params=pltpu.CompilerParams(vmem_limit_bytes=VMEM_LIMIT),
    )(xid, w, b, pool, pw, pb)


# ------------------------------ fused GSN layer ------------------------------ #

def gsn_layer_kernel(src_r_ref, src_c_ref, dst_c_ref, tab_ref,
                     wmi_ref, wmj_ref, bm1_ref, wm2_ref, bm2_ref,
                     wu1x_ref, wu1a_ref, bu1_ref, wu2_ref, bu2_ref,
                     pool_ref, wp_ref, bp_ref,
                     xout_ref, pred_ref,
                     aggr_ref):
    f32 = jnp.float32
    t = pl.program_id(0)
    nt = pl.num_programs(0)
    n_pad = tab_ref.shape[0]
    te = src_c_ref.shape[1]

    @pl.when(t == 0)
    def _():
        aggr_ref[...] = jnp.zeros_like(aggr_ref)

    tab = tab_ref[...]                 # (n_pad, CP) packed [x || id] node table
    src_c = src_c_ref[0]               # (te, 1) int32 ; -1 for padded edges
    dst_c = dst_c_ref[0]               # (te, 1)
    src_r = src_r_ref[0]               # (1, te)

    # --- vectorized edge gather: one-hot MXU matmuls (padded edge -> zero row)
    node_col = lax.broadcasted_iota(jnp.int32, (te, n_pad), 1)
    gi = jnp.dot((node_col == src_c).astype(f32), tab, preferred_element_type=f32)
    gj = jnp.dot((node_col == dst_c).astype(f32), tab, preferred_element_type=f32)

    # --- message MLP on the edge tile (lane-dense MXU matmuls)
    h = jnp.maximum(jnp.dot(gi, wmi_ref[...], preferred_element_type=f32)
                    + jnp.dot(gj, wmj_ref[...], preferred_element_type=f32)
                    + bm1_ref[...], 0.0)
    m = jnp.dot(h, wm2_ref[...], preferred_element_type=f32) + bm2_ref[...]

    # --- vectorized scatter-add (aggr='add' at node i) via transposed one-hot:
    #     padded edges have src == -1 -> all-zero column -> contribute nothing.
    node_row = lax.broadcasted_iota(jnp.int32, (n_pad, te), 0)
    aggr_ref[...] += jnp.dot((node_row == src_r).astype(f32), m,
                             preferred_element_type=f32)

    # --- epilogue (last tile): update MLP + activation + pooling + jk projection
    @pl.when(t == nt - 1)
    def _():
        hu = jnp.maximum(jnp.dot(tab, wu1x_ref[...], preferred_element_type=f32)
                         + jnp.dot(aggr_ref[...], wu1a_ref[...],
                                   preferred_element_type=f32)
                         + bu1_ref[...], 0.0)
        x_out = jnp.maximum(jnp.dot(hu, wu2_ref[...], preferred_element_type=f32)
                            + bu2_ref[...], 0.0)     # module activation; bn[i]=False
        xout_ref[...] = x_out
        xg = jnp.dot(pool_ref[...], x_out, preferred_element_type=f32)
        pred_ref[...] = (jnp.dot(xg, wp_ref[...], preferred_element_type=f32)
                         + bp_ref[...])


def pallas_gsn_layer(src_r, src_c, dst_c, tab, lp, pool, proj_w, proj_b, *,
                     edge_tile):
    nt = src_r.shape[0]
    n_pad, cp = tab.shape
    dh_p = lp['wmi'].shape[1]
    cm_p = lp['wm2'].shape[1]
    co_p = lp['wu2'].shape[1]
    bsz = pool.shape[0]
    p_p = proj_w.shape[1]

    def const(shape):   # grid-invariant, resident across the whole edge grid
        return pl.BlockSpec(shape, lambda t, _s=shape: (0,) * len(_s))

    grid_spec = pltpu.PrefetchScalarGridSpec(
        num_scalar_prefetch=0,
        grid=(nt,),
        in_specs=[
            pl.BlockSpec((1, 1, edge_tile), lambda t: (t, 0, 0)),   # src (row layout)
            pl.BlockSpec((1, edge_tile, 1), lambda t: (t, 0, 0)),   # src (col layout)
            pl.BlockSpec((1, edge_tile, 1), lambda t: (t, 0, 0)),   # dst (col layout)
            const((n_pad, cp)),
            const((cp, dh_p)), const((cp, dh_p)), const((1, dh_p)),
            const((dh_p, cm_p)), const((1, cm_p)),
            const((cp, dh_p)), const((cm_p, dh_p)), const((1, dh_p)),
            const((dh_p, co_p)), const((1, co_p)),
            const((bsz, n_pad)), const((co_p, p_p)), const((1, p_p)),
        ],
        out_specs=(const((n_pad, co_p)), const((bsz, p_p))),
        scratch_shapes=[pltpu.VMEM((n_pad, cm_p), jnp.float32)],   # scatter-add acc
    )
    return pl.pallas_call(
        gsn_layer_kernel,
        out_shape=(jax.ShapeDtypeStruct((n_pad, co_p), jnp.float32),
                   jax.ShapeDtypeStruct((bsz, p_p), jnp.float32)),
        grid_spec=grid_spec,
        compiler_params=pltpu.CompilerParams(
            dimension_semantics=("arbitrary",),    # edge axis reduces into acc
            vmem_limit_bytes=VMEM_LIMIT),
    )(src_r, src_c, dst_c, tab,
      lp['wmi'], lp['wmj'], lp['bm1'], lp['wm2'], lp['bm2'],
      lp['wu1x'], lp['wu1a'], lp['bu1'], lp['wu2'], lp['bu2'],
      pool, proj_w, proj_b)


# ---------------------------------- forward ---------------------------------- #

def gnn_substructures_forward(params, x_raw, ids_raw, edge_index, batch,
                              num_graphs, *, edge_tile=128):
    f32 = jnp.float32
    n, fin = x_raw.shape
    nid = ids_raw.shape[1]
    out_features = params['proj'][0]['w'].shape[1]
    d_node = params['node_w'].shape[1]
    d_id = params['id_w'].shape[1]

    n_pad = _rup(n, SUB)
    finp = _rup(fin + nid, LANE)
    p_p = _rup(out_features, LANE)

    # packed raw input [x || id] (padded entries zero)
    xid = jnp.zeros((n_pad, finp), f32)
    xid = xid.at[:n, :fin].set(x_raw.astype(f32))
    xid = xid.at[:n, fin:fin + nid].set(ids_raw.astype(f32))

    # graph pooling matrix [B, n_pad]; zero columns for padded nodes
    pool = (batch[None, :] == jnp.arange(num_graphs, dtype=batch.dtype)[:, None])
    pool = jnp.pad(pool.astype(f32), ((0, 0), (0, n_pad - n)))

    # fused node+id encoders -> packed table weights (block structured)
    cp0 = _rup(d_node + d_id, LANE)
    enc_w = jnp.zeros((finp, cp0), f32)
    enc_w = enc_w.at[:fin, :d_node].set(params['node_w'])
    enc_w = enc_w.at[fin:fin + nid, d_node:d_node + d_id].set(params['id_w'])
    enc_b = jnp.zeros((1, cp0), f32)
    enc_b = enc_b.at[:, :d_node].set(params['node_b'])
    enc_b = enc_b.at[:, d_node:d_node + d_id].set(params['id_b'])
    proj0_w = _pad2(params['proj'][0]['w'], cp0, p_p)
    proj0_b = _pad2(params['proj'][0]['b'], 1, p_p)

    # TODO(synk): BatchNorm1d (bn=[False]) and dropout (p=0, eval mode) are
    # identity under the realized config, so they are not emitted.
    tab0, pred = pallas_encode(xid, enc_w, enc_b, pool, proj0_w, proj0_b)
    ids_block = tab0[:, d_node:d_node + d_id]   # constant id encoding, reused per layer

    # edge endpoints, padded to a multiple of edge_tile with -1 sentinels
    # (-1 never matches a node index -> one-hot rows/cols all zero)
    src = edge_index[0].astype(jnp.int32)
    dst = edge_index[1].astype(jnp.int32)
    e_real = int(src.shape[0])
    e_pad = _rup(max(e_real, 1), edge_tile)
    nt = e_pad // edge_tile
    src_p = jnp.pad(src, (0, e_pad - e_real), constant_values=-1)
    dst_p = jnp.pad(dst, (0, e_pad - e_real), constant_values=-1)
    src_r = src_p.reshape(nt, 1, edge_tile)
    src_c = src_p.reshape(nt, edge_tile, 1)
    dst_c = dst_p.reshape(nt, edge_tile, 1)

    x_cur = tab0
    d_in = d_node
    for i, lp in enumerate(params['layers']):
        dh = lp['bm1'].shape[1]
        dmsg = lp['wm2'].shape[1]
        dout = lp['wu2'].shape[1]
        cp = _rup(d_in + d_id, LANE)
        dh_p = _rup(dh, LANE)
        cm_p = _rup(dmsg, LANE)
        co_p = _rup(dout, LANE)

        # packed [x || id] node table for this layer
        if i == 0:
            tab_l = x_cur                      # encoder already emits packed table
        else:
            tab_l = jnp.zeros((n_pad, cp), f32)
            tab_l = tab_l.at[:, :d_in].set(x_cur[:, :d_in])
            tab_l = tab_l.at[:, d_in:d_in + d_id].set(ids_block)

        # message-MLP first layer split into i-/j- halves over the packed layout
        wmi = jnp.zeros((cp, dh_p), f32)
        wmi = wmi.at[:d_in, :dh].set(lp['wm1_xi'])
        wmi = wmi.at[d_in:d_in + d_id, :dh].set(lp['wm1_ii'])
        wmj = jnp.zeros((cp, dh_p), f32)
        wmj = wmj.at[:d_in, :dh].set(lp['wm1_xj'])
        wmj = wmj.at[d_in:d_in + d_id, :dh].set(lp['wm1_ij'])

        lp_pad = dict(
            wmi=wmi, wmj=wmj,
            bm1=_pad2(lp['bm1'], 1, dh_p),
            wm2=_pad2(lp['wm2'], dh_p, cm_p),
            bm2=_pad2(lp['bm2'], 1, cm_p),
            wu1x=_pad2(lp['wu1_x'], cp, dh_p),   # id rows stay zero
            wu1a=_pad2(lp['wu1_a'], cm_p, dh_p),
            bu1=_pad2(lp['bu1'], 1, dh_p),
            wu2=_pad2(lp['wu2'], dh_p, co_p),
            bu2=_pad2(lp['bu2'], 1, co_p),
        )
        proj_w = _pad2(params['proj'][i + 1]['w'], co_p, p_p)
        proj_b = _pad2(params['proj'][i + 1]['b'], 1, p_p)

        x_cur, pred_i = pallas_gsn_layer(
            src_r, src_c, dst_c, tab_l, lp_pad, pool, proj_w, proj_b,
            edge_tile=edge_tile)
        pred = pred + pred_i
        d_in = dout

    return pred[:, :out_features]


# ----------------------------- params & reference ----------------------------- #

def init_params(key, in_features, num_id, d_node, d_id, d_msg, d_h, d_out,
                out_features):
    num_layers = len(d_out)
    ks = list(jax.random.split(key, 2 + 4 * num_layers + num_layers + 1))
    ki = iter(ks)

    def lin(k, din, dout):
        kw, kb = jax.random.split(k)
        s = 1.0 / jnp.sqrt(din)
        return (jax.random.uniform(kw, (din, dout), jnp.float32, -s, s),
                jax.random.uniform(kb, (1, dout), jnp.float32, -s, s))

    node_w, node_b = lin(next(ki), in_features, d_node)
    id_w, id_b = lin(next(ki), num_id, d_id)

    layers = []
    d_in = d_node
    for i in range(num_layers):
        wm1, bm1 = lin(next(ki), 2 * d_in + 2 * d_id, d_h[i])
        wm2, bm2 = lin(next(ki), d_h[i], d_msg[i])
        wu1, bu1 = lin(next(ki), d_in + d_msg[i], d_h[i])
        wu2, bu2 = lin(next(ki), d_h[i], d_out[i])
        layers.append(dict(
            wm1_xi=wm1[:d_in], wm1_xj=wm1[d_in:2 * d_in],
            wm1_ii=wm1[2 * d_in:2 * d_in + d_id], wm1_ij=wm1[2 * d_in + d_id:],
            bm1=bm1, wm2=wm2, bm2=bm2,
            wu1_x=wu1[:d_in], wu1_a=wu1[d_in:], bu1=bu1, wu2=wu2, bu2=bu2))
        d_in = d_out[i]

    proj = []
    dims = [d_node] + list(d_out)
    for i in range(num_layers + 1):
        w, b = lin(next(ki), dims[i], out_features)
        proj.append(dict(w=w, b=b))

    return dict(node_w=node_w, node_b=node_b, id_w=id_w, id_b=id_b,
                layers=layers, proj=proj)


def reference_forward(params, x_raw, ids_raw, edge_index, batch, num_graphs):
    src, dst = edge_index[0], edge_index[1]
    x = x_raw @ params['node_w'] + params['node_b']
    ids = ids_raw @ params['id_w'] + params['id_b']
    x_interm = [x]
    for lp in params['layers']:
        xi = x_interm[-1]
        wm1 = jnp.concatenate(
            [lp['wm1_xi'], lp['wm1_xj'], lp['wm1_ii'], lp['wm1_ij']], 0)
        m_in = jnp.concatenate([xi[src], xi[dst], ids[src], ids[dst]], -1)
        h = jax.nn.relu(m_in @ wm1 + lp['bm1'])
        m = h @ lp['wm2'] + lp['bm2']
        aggr = jax.ops.segment_sum(m, src, num_segments=xi.shape[0])
        wu1 = jnp.concatenate([lp['wu1_x'], lp['wu1_a']], 0)
        hu = jax.nn.relu(jnp.concatenate([xi, aggr], -1) @ wu1 + lp['bu1'])
        x_interm.append(jax.nn.relu(hu @ lp['wu2'] + lp['bu2']))
    pred = jnp.zeros((num_graphs, params['proj'][0]['w'].shape[1]), jnp.float32)
    for xi, pp in zip(x_interm, params['proj']):
        xg = jax.ops.segment_sum(xi, batch, num_segments=num_graphs)
        pred = pred + xg @ pp['w'] + pp['b']
    return pred


# ------------------------------------ main ------------------------------------ #

if __name__ == "__main__":
    key = jax.random.PRNGKey(0)
    N_PER, B = 8, 2          # 2 graphs, 8 nodes each
    N = N_PER * B
    E_PER = 24
    IN_FEAT, NUM_ID = 8, 4
    D_NODE, D_ID = 32, 16
    D_MSG, D_H, D_OUT = [32, 32], [64, 64], [32, 32]
    OUT_FEATURES = 7

    k_x, k_id, k_e1, k_e2, k_p = jax.random.split(key, 5)
    x_raw = jax.random.normal(k_x, (N, IN_FEAT), jnp.float32)
    ids_raw = jax.random.randint(k_id, (N, NUM_ID), 0, 5).astype(jnp.float32)
    src = jnp.concatenate(
        [jax.random.randint(k_e1, (E_PER,), 0, N_PER) + g * N_PER for g in range(B)])
    dst = jnp.concatenate(
        [jax.random.randint(k_e2, (E_PER,), 0, N_PER) + g * N_PER for g in range(B)])
    edge_index = jnp.stack([src, dst]).astype(jnp.int32)
    batch = jnp.repeat(jnp.arange(B, dtype=jnp.int32), N_PER)

    params = init_params(k_p, IN_FEAT, NUM_ID, D_NODE, D_ID, D_MSG, D_H, D_OUT,
                         OUT_FEATURES)

    # edge_tile=128 fills the MXU on all chips; use 256 on v6e/v7x for large E.
    pred = gnn_substructures_forward(params, x_raw, ids_raw, edge_index, batch,
                                     B, edge_tile=128)
    pred = jax.block_until_ready(pred)

    ref = reference_forward(params, x_raw, ids_raw, edge_index, batch, B)
    assert pred.shape == (B, OUT_FEATURES)
    assert jnp.allclose(pred, ref, atol=2e-4, rtol=2e-4)
    print("KERNEL_OK")
</pallas_src>

<mosaic_0001>
module attributes {stable_mosaic.version = 11 : i64} {
  func.func @encode_kernel(%arg0: memref<16x128xf32, #tpu.memory_space<vmem>>, %arg1: memref<128x128xf32, #tpu.memory_space<vmem>>, %arg2: memref<1x128xf32, #tpu.memory_space<vmem>>, %arg3: memref<2x16xf32, #tpu.memory_space<vmem>>, %arg4: memref<128x128xf32, #tpu.memory_space<vmem>>, %arg5: memref<1x128xf32, #tpu.memory_space<vmem>>, %arg6: memref<16x128xf32, #tpu.memory_space<vmem>>, %arg7: memref<2x128xf32, #tpu.memory_space<vmem>>) attributes {dimension_semantics = [], scalar_prefetch = 0 : i64, scratch_operands = 0 : i64, tpu.core_type = #tpu.core_type<tc>} {
    %c0 = arith.constant 0 : index
    %c0_0 = arith.constant 0 : index
    %0 = vector.load %arg0[%c0, %c0_0] : memref<16x128xf32, #tpu.memory_space<vmem>>, vector<16x128xf32>
    %c0_1 = arith.constant 0 : index
    %c0_2 = arith.constant 0 : index
    %1 = vector.load %arg1[%c0_1, %c0_2] : memref<128x128xf32, #tpu.memory_space<vmem>>, vector<128x128xf32>
    %cst = arith.constant dense<0.000000e+00> : vector<16x128xf32>
    %2 = tpu.matmul %0, %1, %cst {dimension_numbers = #tpu.dot_dimension_numbers<[1], [0], [0], [1], [0, 0, 1, 1], [], []>} : vector<16x128xf32>, vector<128x128xf32>, vector<16x128xf32> -> vector<16x128xf32>
    %c0_3 = arith.constant 0 : index
    %c0_4 = arith.constant 0 : index
    %3 = vector.load %arg2[%c0_3, %c0_4] : memref<1x128xf32, #tpu.memory_space<vmem>>, vector<1x128xf32>
    %4 = vector.broadcast %3 : vector<1x128xf32> to vector<16x128xf32>
    %5 = arith.addf %2, %4 : vector<16x128xf32>
    %c0_5 = arith.constant 0 : index
    %c0_6 = arith.constant 0 : index
    %6 = vector.load %arg6[%c0_5, %c0_6] : memref<16x128xf32, #tpu.memory_space<vmem>>, vector<16x128xf32>
    tpu.vector_store %arg6[%c0_5, %c0_6], %5 {strides = array<i32>} : memref<16x128xf32, #tpu.memory_space<vmem>>, vector<16x128xf32>,
    %c0_7 = arith.constant 0 : index
    %c0_8 = arith.constant 0 : index
    %7 = vector.load %arg3[%c0_7, %c0_8] : memref<2x16xf32, #tpu.memory_space<vmem>>, vector<2x16xf32>
    %cst_9 = arith.constant dense<0.000000e+00> : vector<2x128xf32>
    %8 = tpu.matmul %7, %5, %cst_9 {dimension_numbers = #tpu.dot_dimension_numbers<[1], [0], [0], [1], [0, 0, 1, 1], [], []>} : vector<2x16xf32>, vector<16x128xf32>, vector<2x128xf32> -> vector<2x128xf32>
    %c0_10 = arith.constant 0 : index
    %c0_11 = arith.constant 0 : index
    %9 = vector.load %arg4[%c0_10, %c0_11] : memref<128x128xf32, #tpu.memory_space<vmem>>, vector<128x128xf32>
    %cst_12 = arith.constant dense<0.000000e+00> : vector<2x128xf32>
    %10 = tpu.matmul %8, %9, %cst_12 {dimension_numbers = #tpu.dot_dimension_numbers<[1], [0], [0], [1], [0, 0, 1, 1], [], []>} : vector<2x128xf32>, vector<128x128xf32>, vector<2x128xf32> -> vector<2x128xf32>
    %c0_13 = arith.constant 0 : index
    %c0_14 = arith.constant 0 : index
    %11 = vector.load %arg5[%c0_13, %c0_14] : memref<1x128xf32, #tpu.memory_space<vmem>>, vector<1x128xf32>
    %12 = vector.broadcast %11 : vector<1x128xf32> to vector<2x128xf32>
    %13 = arith.addf %10, %12 : vector<2x128xf32>
    %c0_15 = arith.constant 0 : index
    %c0_16 = arith.constant 0 : index
    %14 = vector.load %arg7[%c0_15, %c0_16] : memref<2x128xf32, #tpu.memory_space<vmem>>, vector<2x128xf32>
    tpu.vector_store %arg7[%c0_15, %c0_16], %13 {strides = array<i32>} : memref<2x128xf32, #tpu.memory_space<vmem>>, vector<2x128xf32>,
    return
  }
}

</mosaic_0001>

<llo_original>
// kernel: tpu_custom_call.1
$region0: #{tpu_custom_call.1}
  #allocation0 [shape = 'u32[]', space=smem, size = 0x4, offset = 0x4, fixed_abs, tag = 'smem constant byte address 0x4 - core index']
  #allocation1 [shape = 'u32[144,128]{1,0:T(1,128)}', space=vmem, size = 0x12000, scoped, tag = 'internal scratch']
  %s0 = inlined_call_operand.hbm [shape: f32[16,128], index: 0, kind: input, shape index: {}]
  %s1 = inlined_call_operand.hbm [shape: f32[128,128], index: 1, kind: input, shape index: {}]
  %s2 = inlined_call_operand.vmem [shape: f32[1,128], index: 2, kind: input, shape index: {}]
  %s3 = inlined_call_operand.vmem [shape: f32[2,16], index: 3, kind: input, shape index: {}]
  %s4 = inlined_call_operand.hbm [shape: f32[128,128], index: 4, kind: input, shape index: {}]
  %s5 = inlined_call_operand.vmem [shape: f32[1,128], index: 5, kind: input, shape index: {}]
  %s6 = inlined_call_operand.hbm [shape: f32[16,128], index: 6, kind: output, shape index: {0}]
  %s7 = inlined_call_operand.hbm [shape: f32[2,128], index: 7, kind: output, shape index: {1}]
  %8 = xla_tuple %s6, %s7
  %s9 = sld [smem:[#allocation0]]
  $region54: #{tpu_custom_call.1} parent=0
    _
  %s11 = ssub.s32 1, %s9
  %s12 = scalar_select 0, %s11, %s9
  $region1: #{tpu_custom_call.1} parent=0
    #allocation2 [shape = 'u8[8192]{0}', space=vmem, size = 0x2000, scoped, tag = 'input window, operand 0, single buffered']
    #allocation3 [shape = 's32[1]{0}', space=sflag, size = 0x4, scoped, tag = 'scoped memory for tpu_custom_call.1']
    #allocation4 [shape = 's32[1]{0}', space=sflag, size = 0x4, scoped, tag = 'scoped memory for tpu_custom_call.1']
    #allocation5 [shape = 'u8[65536]{0}', space=vmem, size = 0x10000, scoped, tag = 'input window, operand 1, single buffered']
    #allocation6 [shape = 's32[1]{0}', space=sflag, size = 0x4, scoped, tag = 'scoped memory for tpu_custom_call.1']
    #allocation7 [shape = 'u8[65536]{0}', space=vmem, size = 0x10000, scoped, tag = 'input window, operand 4, single buffered']
    #allocation8 [shape = 'u8[8192]{0}', space=vmem, size = 0x2000, scoped, tag = 'output window, operand 0, single buffered']
    #allocation9 [shape = 'u8[1024]{0}', space=vmem, size = 0x400, scoped, tag = 'output window, operand 1, single buffered']
    #allocation10 [shape = 's32[1]{0}', space=sflag, size = 0x4, scoped, tag = 'scoped memory for tpu_custom_call.1']
    %13 = vsyncpa [#allocation3], 0
    %14 = vsyncpa [#allocation6], 0
    %15 = vsyncpa [#allocation4], 0
    %16 = vsyncpa [#allocation10], 0
    // Predicated region
    $region2: #{tpu_custom_call.1} parent=1 // pred_check
      _
    $region3: #{tpu_custom_call.1} parent=1 // pred_check_branch
      %18 = sbr.rel (0) target = $region5
    $region4: #{tpu_custom_call.1} parent=1 // pred_region
      %s20 = ssub.s32 256, 256
      %21 = vsyncadd [#allocation3], %s20
      %s22 = sshll.u32 [#allocation2], 4
      %s23 = int_to_ptr.vmem [resolvable:$true] %s22
      %28 = dma.hbm_to_vmem [thread:$0]  %s0, 256, %s23, [#allocation3], 128, 128, 8
    $region5: #{tpu_custom_call.1} parent=1 // pred_fallthru
      _
    // Predicated region
    $region6: #{tpu_custom_call.1} parent=1 // pred_check
      _
    $region7: #{tpu_custom_call.1} parent=1 // pred_check_branch
      %30 = sbr.rel (0) target = $region9
    $region8: #{tpu_custom_call.1} parent=1 // pred_region
      %s32 = ssub.s32 2048, 2048
      %33 = vsyncadd [#allocation6], %s32
      %s34 = sshll.u32 [#allocation5], 4
      %s35 = int_to_ptr.vmem [resolvable:$true] %s34
      %40 = dma.hbm_to_vmem [thread:$0]  %s1, 2048, %s35, [#allocation6], 128, 128, 8
    $region9: #{tpu_custom_call.1} parent=1 // pred_fallthru
      _
    // Predicated region
    $region10: #{tpu_custom_call.1} parent=1 // pred_check
      _
    $region11: #{tpu_custom_call.1} parent=1 // pred_check_branch
      %42 = sbr.rel (0) target = $region13
    $region12: #{tpu_custom_call.1} parent=1 // pred_region
      _
    $region13: #{tpu_custom_call.1} parent=1 // pred_fallthru
      _
    // Predicated region
    $region14: #{tpu_custom_call.1} parent=1 // pred_check
      _
    $region15: #{tpu_custom_call.1} parent=1 // pred_check_branch
      %44 = sbr.rel (0) target = $region17
    $region16: #{tpu_custom_call.1} parent=1 // pred_region
      _
    $region17: #{tpu_custom_call.1} parent=1 // pred_fallthru
      _
    // Predicated region
    $region18: #{tpu_custom_call.1} parent=1 // pred_check
      _
    $region19: #{tpu_custom_call.1} parent=1 // pred_check_branch
      %46 = sbr.rel (0) target = $region21
    $region20: #{tpu_custom_call.1} parent=1 // pred_region
      %s48 = ssub.s32 2048, 2048
      %49 = vsyncadd [#allocation6], %s48
      %s50 = sshll.u32 [#allocation7], 4
      %s51 = int_to_ptr.vmem [resolvable:$true] %s50
      %56 = dma.hbm_to_vmem [thread:$0]  %s4, 2048, %s51, [#allocation6], 128, 128, 8
    $region21: #{tpu_custom_call.1} parent=1 // pred_fallthru
      _
    // Predicated region
    $region22: #{tpu_custom_call.1} parent=1 // pred_check
      _
    $region23: #{tpu_custom_call.1} parent=1 // pred_check_branch
      %58 = sbr.rel (0) target = $region25
    $region24: #{tpu_custom_call.1} parent=1 // pred_region
      _
    $region25: #{tpu_custom_call.1} parent=1 // pred_fallthru
      _
    // Predicated region
    $region26: #{tpu_custom_call.1} parent=1 // pred_check
      _
    $region27: #{tpu_custom_call.1} parent=1 // pred_check_branch
      %60 = sbr.rel (0) target = $region29
    $region28: #{tpu_custom_call.1} parent=1 // pred_region
      %61 = dma.done [#allocation3], 256
    $region29: #{tpu_custom_call.1} parent=1 // pred_fallthru
      _
    // Predicated region
    $region30: #{tpu_custom_call.1} parent=1 // pred_check
      _
    $region31: #{tpu_custom_call.1} parent=1 // pred_check_branch
      %63 = sbr.rel (0) target = $region33
    $region32: #{tpu_custom_call.1} parent=1 // pred_region
      %64 = dma.done [#allocation6], 2048
    $region33: #{tpu_custom_call.1} parent=1 // pred_fallthru
      _
    // Predicated region
    $region34: #{tpu_custom_call.1} parent=1 // pred_check
      _
    $region35: #{tpu_custom_call.1} parent=1 // pred_check_branch
      %66 = sbr.rel (0) target = $region37
    $region36: #{tpu_custom_call.1} parent=1 // pred_region
      %67 = dma.done [#allocation6], 2048
    $region37: #{tpu_custom_call.1} parent=1 // pred_fallthru
      _
    %v68 = vld [vmem:[#allocation2] sm:$0xff]
    %v69 = vld [vmem:[#allocation2 + $0x8] sm:$0xff]
    %v70 = vld [vmem:[#allocation5] sm:$0xff]
    %v71 = vld [vmem:[#allocation5 + $0x8] sm:$0xff]
    %v72 = vld [vmem:[#allocation5 + $0x10] sm:$0xff]
    %v73 = vld [vmem:[#allocation5 + $0x18] sm:$0xff]
    %v74 = vld [vmem:[#allocation5 + $0x20] sm:$0xff]
    %v75 = vld [vmem:[#allocation5 + $0x28] sm:$0xff]
    %v76 = vld [vmem:[#allocation5 + $0x30] sm:$0xff]
    %v77 = vld [vmem:[#allocation5 + $0x38] sm:$0xff]
    %v78 = vld [vmem:[#allocation5 + $0x40] sm:$0xff]
    %v79 = vld [vmem:[#allocation5 + $0x48] sm:$0xff]
    %v80 = vld [vmem:[#allocation5 + $0x50] sm:$0xff]
    %v81 = vld [vmem:[#allocation5 + $0x58] sm:$0xff]
    %v82 = vld [vmem:[#allocation5 + $0x60] sm:$0xff]
    %v83 = vld [vmem:[#allocation5 + $0x68] sm:$0xff]
    %v84 = vld [vmem:[#allocation5 + $0x70] sm:$0xff]
    %v85 = vld [vmem:[#allocation5 + $0x78] sm:$0xff]
    %v86 = vld [vmem:[%s2] sm:$0x1]
    %v88 = vlaneseq
    %v89 = vshrl.u32 %v88, 7
    %v90 = vsub.s32 0, %v89
    %v91 = vrot.slane %v86, %v90
    %93 = vmatprep.subr.mxu0 0.0
    %94 = vmatpush1.msra.mxu0 %v70
    %95 = vmatprep.subr.mxu0 0.0
    %96 = vmatpush1.msra.mxu0 %v71
    %97 = vmatprep.subr.mxu0 0.0
    %98 = vmatpush1.msra.mxu0 %v72
    %99 = vmatprep.subr.mxu0 0.0
    %100 = vmatpush1.msra.mxu0 %v73
    %101 = vmatprep.subr.mxu0 0.0
    %102 = vmatpush1.msra.mxu0 %v74
    %103 = vmatprep.subr.mxu0 0.0
    %104 = vmatpush1.msra.mxu0 %v75
    %105 = vmatprep.subr.mxu0 0.0
    %106 = vmatpush1.msra.mxu0 %v76
    %107 = vmatprep.subr.mxu0 0.0
    %108 = vmatpush1.msra.mxu0 %v77
    %109 = vmatprep.subr.mxu0 0.0
    %110 = vmatpush1.msra.mxu0 %v78
    %111 = vmatprep.subr.mxu0 0.0
    %112 = vmatpush1.msra.mxu0 %v79
    %113 = vmatprep.subr.mxu0 0.0
    %114 = vmatpush1.msra.mxu0 %v80
    %115 = vmatprep.subr.mxu0 0.0
    %116 = vmatpush1.msra.mxu0 %v81
    %117 = vmatprep.subr.mxu0 0.0
    %118 = vmatpush1.msra.mxu0 %v82
    %119 = vmatprep.subr.mxu0 0.0
    %120 = vmatpush1.msra.mxu0 %v83
    %121 = vmatprep.subr.mxu0 0.0
    %122 = vmatpush1.msra.mxu0 %v84
    %123 = vmatprep.subr.mxu0 0.0
    %124 = vmatpush1.msra.mxu0 %v85
    %125 = vmatprep.subr.mxu0 0.0
    %126 = vmatpush1.msra.mxu0 0.0
    %127 = vmatprep.subr.mxu0 0.0
    %128 = vmatpush1.msra.mxu0 0.0
    %129 = vmatprep.subr.mxu0 0.0
    %130 = vmatpush1.msra.mxu0 0.0
    %131 = vmatprep.subr.mxu0 0.0
    %132 = vmatpush1.msra.mxu0 0.0
    %133 = vmatprep.subr.mxu0 0.0
    %134 = vmatpush1.msra.mxu0 0.0
    %135 = vmatprep.subr.mxu0 0.0
    %136 = vmatpush1.msra.mxu0 0.0
    %137 = vmatprep.subr.mxu0 0.0
    %138 = vmatpush1.msra.mxu0 0.0
    %139 = vmatprep.subr.mxu0 0.0
    %140 = vmatpush1.msra.mxu0 0.0
    %141 = vmatprep.subr.mxu0 0.0
    %142 = vmatpush1.msra.mxu0 0.0
    %143 = vmatprep.subr.mxu0 0.0
    %144 = vmatpush1.msra.mxu0 0.0
    %145 = vmatprep.subr.mxu0 0.0
    %146 = vmatpush1.msra.mxu0 0.0
    %147 = vmatprep.subr.mxu0 0.0
    %148 = vmatpush1.msra.mxu0 0.0
    %149 = vmatprep.subr.mxu0 0.0
    %150 = vmatpush1.msra.mxu0 0.0
    %151 = vmatprep.subr.mxu0 0.0
    %152 = vmatpush1.msra.mxu0 0.0
    %153 = vmatprep.subr.mxu0 0.0
    %154 = vmatpush1.msra.mxu0 0.0
    %155 = vmatprep.subr.mxu0 0.0
    %156 = vmatpush1.msra.mxu0 0.0
    %157 = vmatprep.mubr.f32.mxu0 0.0
    %158 = vmatmul.mubr.f32.gmra.mrb[0].mxu0 %v68
    %v159 = vpop.f32.mrb[0].mxu0
    %v160 = vadd.f32 %v91, %v159
    %v161 = vpop.f32.mrb[0].mxu0
    %162 = vmatprep.mubr.f32.mxu0 0.0
    %163 = vmatmul.mubr.f32.gmra.mrb[0].mxu0 %v69
    %v164 = vpop.f32.mrb[0].mxu0
    %v165 = vadd.f32 %v91, %v164
    %v166 = vpop.f32.mrb[0].mxu0
    %167 = vdwg.mxu0
    %168 = vst [vmem:[#allocation8] sm:$0xff] %v160
    %169 = vst [vmem:[#allocation8 + $0x8] sm:$0xff] %v165
    %v170 = vld [vmem:[%s3] sm:$0x3]
    %vm171 = vcmask 130048
    %v173 = vsel %vm171, %v170, 0
    %175 = vmatprep.subr.mxu0 0.0
    %176 = vmatpush1.msra.mxu0 %v160
    %177 = vmatprep.subr.mxu0 0.0
    %178 = vmatpush1.msra.mxu0 %v165
    %179 = vmatprep.subr.mxu0 0.0
    %180 = vmatpush1.msra.mxu0 0.0
    %181 = vmatprep.subr.mxu0 0.0
    %182 = vmatpush1.msra.mxu0 0.0
    %183 = vmatprep.subr.mxu0 0.0
    %184 = vmatpush1.msra.mxu0 0.0
    %185 = vmatprep.subr.mxu0 0.0
    %186 = vmatpush1.msra.mxu0 0.0
    %187 = vmatprep.subr.mxu0 0.0
    %188 = vmatpush1.msra.mxu0 0.0
    %189 = vmatprep.subr.mxu0 0.0
    %190 = vmatpush1.msra.mxu0 0.0
    %191 = vmatprep.subr.mxu0 0.0
    %192 = vmatpush1.msra.mxu0 0.0
    %193 = vmatprep.subr.mxu0 0.0
    %194 = vmatpush1.msra.mxu0 0.0
    %195 = vmatprep.subr.mxu0 0.0
    %196 = vmatpush1.msra.mxu0 0.0
    %197 = vmatprep.subr.mxu0 0.0
    %198 = vmatpush1.msra.mxu0 0.0
    %199 = vmatprep.subr.mxu0 0.0
    %200 = vmatpush1.msra.mxu0 0.0
    %201 = vmatprep.subr.mxu0 0.0
    %202 = vmatpush1.msra.mxu0 0.0
    %203 = vmatprep.subr.mxu0 0.0
    %204 = vmatpush1.msra.mxu0 0.0
    %205 = vmatprep.subr.mxu0 0.0
    %206 = vmatpush1.msra.mxu0 0.0
    %207 = vmatprep.subr.mxu0 0.0
    %208 = vmatpush1.msra.mxu0 0.0
    %209 = vmatprep.subr.mxu0 0.0
    %210 = vmatpush1.msra.mxu0 0.0
    %211 = vmatprep.subr.mxu0 0.0
    %212 = vmatpush1.msra.mxu0 0.0
    %213 = vmatprep.subr.mxu0 0.0
    %214 = vmatpush1.msra.mxu0 0.0
    %215 = vmatprep.subr.mxu0 0.0
    %216 = vmatpush1.msra.mxu0 0.0
    %217 = vmatprep.subr.mxu0 0.0
    %218 = vmatpush1.msra.mxu0 0.0
    %219 = vmatprep.subr.mxu0 0.0
    %220 = vmatpush1.msra.mxu0 0.0
    %221 = vmatprep.subr.mxu0 0.0
    %222 = vmatpush1.msra.mxu0 0.0
    %223 = vmatprep.subr.mxu0 0.0
    %224 = vmatpush1.msra.mxu0 0.0
    %225 = vmatprep.subr.mxu0 0.0
    %226 = vmatpush1.msra.mxu0 0.0
    %227 = vmatprep.subr.mxu0 0.0
    %228 = vmatpush1.msra.mxu0 0.0
    %229 = vmatprep.subr.mxu0 0.0
    %230 = vmatpush1.msra.mxu0 0.0
    %231 = vmatprep.subr.mxu0 0.0
    %232 = vmatpush1.msra.mxu0 0.0
    %233 = vmatprep.subr.mxu0 0.0
    %234 = vmatpush1.msra.mxu0 0.0
    %235 = vmatprep.subr.mxu0 0.0
    %236 = vmatpush1.msra.mxu0 0.0
    %237 = vmatprep.subr.mxu0 0.0
    %238 = vmatpush1.msra.mxu0 0.0
    %239 = vmatprep.mubr.f32.mxu0 0.0
    %240 = vmatmul.mubr.f32.gmra.mrb[0].mxu0 %v173
    %v241 = vpop.f32.mrb[0].mxu0
    %v242 = vadd.f32 0.0, %v241
    %v243 = vpop.f32.mrb[0].mxu0
    %244 = vdwg.mxu0
    %v245 = vld [vmem:[#allocation7] sm:$0xff]
    %v246 = vld [vmem:[#allocation7 + $0x8] sm:$0xff]
    %v247 = vld [vmem:[#allocation7 + $0x10] sm:$0xff]
    %v248 = vld [vmem:[#allocation7 + $0x18] sm:$0xff]
    %v249 = vld [vmem:[#allocation7 + $0x20] sm:$0xff]
    %v250 = vld [vmem:[#allocation7 + $0x28] sm:$0xff]
    %v251 = vld [vmem:[#allocation7 + $0x30] sm:$0xff]
    %v252 = vld [vmem:[#allocation7 + $0x38] sm:$0xff]
    %v253 = vld [vmem:[#allocation7 + $0x40] sm:$0xff]
    %v254 = vld [vmem:[#allocation7 + $0x48] sm:$0xff]
    %v255 = vld [vmem:[#allocation7 + $0x50] sm:$0xff]
    %v256 = vld [vmem:[#allocation7 + $0x58] sm:$0xff]
    %v257 = vld [vmem:[#allocation7 + $0x60] sm:$0xff]
    %v258 = vld [vmem:[#allocation7 + $0x68] sm:$0xff]
    %v259 = vld [vmem:[#allocation7 + $0x70] sm:$0xff]
    %v260 = vld [vmem:[#allocation7 + $0x78] sm:$0xff]
    %v261 = vld [vmem:[%s5] sm:$0x1]
    %v263 = vlaneseq
    %v264 = vshrl.u32 %v263, 7
    %v265 = vsub.s32 0, %v264
    %v266 = vrot.slane %v261, %v265
    %268 = vmatprep.subr.mxu0 0.0
    %269 = vmatpush1.msra.mxu0 %v245
    %270 = vmatprep.subr.mxu0 0.0
    %271 = vmatpush1.msra.mxu0 %v246
    %272 = vmatprep.subr.mxu0 0.0
    %273 = vmatpush1.msra.mxu0 %v247
    %274 = vmatprep.subr.mxu0 0.0
    %275 = vmatpush1.msra.mxu0 %v248
    %276 = vmatprep.subr.mxu0 0.0
    %277 = vmatpush1.msra.mxu0 %v249
    %278 = vmatprep.subr.mxu0 0.0
    %279 = vmatpush1.msra.mxu0 %v250
    %280 = vmatprep.subr.mxu0 0.0
    %281 = vmatpush1.msra.mxu0 %v251
    %282 = vmatprep.subr.mxu0 0.0
    %283 = vmatpush1.msra.mxu0 %v252
    %284 = vmatprep.subr.mxu0 0.0
    %285 = vmatpush1.msra.mxu0 %v253
    %286 = vmatprep.subr.mxu0 0.0
    %287 = vmatpush1.msra.mxu0 %v254
    %288 = vmatprep.subr.mxu0 0.0
    %289 = vmatpush1.msra.mxu0 %v255
    %290 = vmatprep.subr.mxu0 0.0
    %291 = vmatpush1.msra.mxu0 %v256
    %292 = vmatprep.subr.mxu0 0.0
    %293 = vmatpush1.msra.mxu0 %v257
    %294 = vmatprep.subr.mxu0 0.0
    %295 = vmatpush1.msra.mxu0 %v258
    %296 = vmatprep.subr.mxu0 0.0
    %297 = vmatpush1.msra.mxu0 %v259
    %298 = vmatprep.subr.mxu0 0.0
    %299 = vmatpush1.msra.mxu0 %v260
    %300 = vmatprep.subr.mxu0 0.0
    %301 = vmatpush1.msra.mxu0 0.0
    %302 = vmatprep.subr.mxu0 0.0
    %303 = vmatpush1.msra.mxu0 0.0
    %304 = vmatprep.subr.mxu0 0.0
    %305 = vmatpush1.msra.mxu0 0.0
    %306 = vmatprep.subr.mxu0 0.0
    %307 = vmatpush1.msra.mxu0 0.0
    %308 = vmatprep.subr.mxu0 0.0
    %309 = vmatpush1.msra.mxu0 0.0
    %310 = vmatprep.subr.mxu0 0.0
    %311 = vmatpush1.msra.mxu0 0.0
    %312 = vmatprep.subr.mxu0 0.0
    %313 = vmatpush1.msra.mxu0 0.0
    %314 = vmatprep.subr.mxu0 0.0
    %315 = vmatpush1.msra.mxu0 0.0
    %316 = vmatprep.subr.mxu0 0.0
    %317 = vmatpush1.msra.mxu0 0.0
    %318 = vmatprep.subr.mxu0 0.0
    %319 = vmatpush1.msra.mxu0 0.0
    %320 = vmatprep.subr.mxu0 0.0
    %321 = vmatpush1.msra.mxu0 0.0
    %322 = vmatprep.subr.mxu0 0.0
    %323 = vmatpush1.msra.mxu0 0.0
    %324 = vmatprep.subr.mxu0 0.0
    %325 = vmatpush1.msra.mxu0 0.0
    %326 = vmatprep.subr.mxu0 0.0
    %327 = vmatpush1.msra.mxu0 0.0
    %328 = vmatprep.subr.mxu0 0.0
    %329 = vmatpush1.msra.mxu0 0.0
    %330 = vmatprep.subr.mxu0 0.0
    %331 = vmatpush1.msra.mxu0 0.0
    %332 = vmatprep.mubr.f32.mxu0 0.0
    %333 = vmatmul.mubr.f32.gmra.mrb[0].mxu0 %v242
    %v334 = vpop.f32.mrb[0].mxu0
    %v335 = vadd.f32 %v266, %v334
    %v336 = vpop.f32.mrb[0].mxu0
    %337 = vdwg.mxu0
    %338 = vst [vmem:[#allocation9] sm:$0x3] %v335
    // Predicated region
    $region38: #{tpu_custom_call.1} parent=1 // pred_check
      _
    $region39: #{tpu_custom_call.1} parent=1 // pred_check_branch
      %340 = sbr.rel (0) target = $region41
    $region40: #{tpu_custom_call.1} parent=1 // pred_region
      %s342 = ssub.s32 256, 256
      %343 = vsyncadd [#allocation4], %s342
      %s344 = sshll.u32 [#allocation8], 4
      %s345 = int_to_ptr.vmem [resolvable:$true] %s344
      %350 = dma.vmem_to_hbm [thread:$0]  %s345, 256, %s6, [#allocation4], 128, 128, 8
    $region41: #{tpu_custom_call.1} parent=1 // pred_fallthru
      _
    // Predicated region
    $region42: #{tpu_custom_call.1} parent=1 // pred_check
      _
    $region43: #{tpu_custom_call.1} parent=1 // pred_check_branch
      %352 = sbr.rel (0) target = $region45
    $region44: #{tpu_custom_call.1} parent=1 // pred_region
      %s354 = ssub.s32 32, 32
      %355 = vsyncadd [#allocation10], %s354
      %s357 = sshll.u32 [#allocation9], 4
      %s358 = int_to_ptr.vmem [resolvable:$true] %s357
      %360 = dma.vmem_to_hbm [thread:$0]  %s358, 32, %s7, [#allocation10]
    $region45: #{tpu_custom_call.1} parent=1 // pred_fallthru
      _
    // Predicated region
    $region46: #{tpu_custom_call.1} parent=1 // pred_check
      _
    $region47: #{tpu_custom_call.1} parent=1 // pred_check_branch
      %362 = sbr.rel (0) target = $region49
    $region48: #{tpu_custom_call.1} parent=1 // pred_region
      %363 = dma.done [#allocation4], 256
    $region49: #{tpu_custom_call.1} parent=1 // pred_fallthru
      _
    // Predicated region
    $region50: #{tpu_custom_call.1} parent=1 // pred_check
      _
    $region51: #{tpu_custom_call.1} parent=1 // pred_check_branch
      %365 = sbr.rel (0) target = $region53
    $region52: #{tpu_custom_call.1} parent=1 // pred_region
      %366 = dma.done [#allocation10], 32
    $region53: #{tpu_custom_call.1} parent=1 // pred_fallthru
      _
    %367 = vsyncpa [#allocation3], 1
    %368 = vsyncpa [#allocation6], 1
    %369 = vsyncpa [#allocation4], 1
    %370 = vsyncpa [#allocation10], 1

</llo_original>
